<compile_context>
chip_gen: v5e
topology: v5e:2x2
jax: 0.10.0
libtpu: 0.0.40
codegen_flags: <defaults>
</compile_context>

<pallas_src>
import functools

import jax
import jax.numpy as jnp
from jax.experimental import pallas as pl
from jax.experimental.pallas import tpu as pltpu  # noqa: F401  (TPU backend; kept for clarity)

# Small, TPU-friendly synthetic shapes.
B = 16        # batch
S = 32        # state (observation) dim
H = 32        # hidden dim of the inner MLP
K = 4         # number of mixture components
T = 8         # prediction horizon (time steps)
A = 4         # action dim per step
TA = T * A    # flattened trajectory dim (32)

KPAD = 128               # logits segment padded to one full lane tile
MU_OFF = KPAD            # column offset of the mean segment in the fused head
LS_OFF = KPAD + K * TA   # column offset of the log-sigma segment
FUSED = KPAD + 2 * K * TA  # 384 fused head columns
NEG = -1e30              # padded-logit noise value (never wins the Gumbel-max)


def gmm_forward_kernel(state_ref, w1_ref, b1_ref, w2_ref, b2_ref,
                       wf_ref, bf_ref, gumbel_ref, eps_ref, out_ref):
    """Fused inner-model MLP + MixtureSameFamily sample, whole batch in one invocation."""
    x = state_ref[...]                                                       # [B, S] f32

    h1 = jnp.maximum(
        jnp.dot(x.astype(jnp.bfloat16), w1_ref[...],
                preferred_element_type=jnp.float32) + b1_ref[...], 0.0)      # [B, H]
    h2 = jnp.maximum(
        jnp.dot(h1.astype(jnp.bfloat16), w2_ref[...],
                preferred_element_type=jnp.float32) + b2_ref[...], 0.0)      # [B, H]

    # One lane-dense fused head matmul: [logits_pad(128) | mu(K*TA) | log_sigma(K*TA)].
    z = jnp.dot(h2.astype(jnp.bfloat16), wf_ref[...],
                preferred_element_type=jnp.float32) + bf_ref[...]            # [B, 384]

    # Gumbel-max categorical sample over the K real components.
    # gumbel_ref is [B, 128] with -1e30 in the K..127 padded columns, so they never win.
    g = z[:, :KPAD] + gumbel_ref[...]                                        # [B, 128]
    gmax = jnp.max(g, axis=-1, keepdims=True)                                # [B, 1]
    lane = jax.lax.broadcasted_iota(jnp.int32, (B, KPAD), 1)
    # first-match argmax (deterministic tie-break), computed once
    kstar = jnp.min(jnp.where(g >= gmax, lane, K), axis=-1, keepdims=True)   # [B, 1] int32

    # Select the winning component's mu / log_sigma (K=4 static slices, VPU-only, no reshapes).
    mu_sel = jnp.zeros((B, TA), jnp.float32)
    ls_sel = jnp.zeros((B, TA), jnp.float32)
    for k in range(K):
        sel_k = (kstar == k).astype(jnp.float32)                             # [B, 1]
        mu_sel = mu_sel + sel_k * z[:, MU_OFF + k * TA: MU_OFF + (k + 1) * TA]
        ls_sel = ls_sel + sel_k * z[:, LS_OFF + k * TA: LS_OFF + (k + 1) * TA]

    # Reparameterized Normal sample; exp() only on the selected component (EUP, one call).
    out_ref[...] = mu_sel + jnp.exp(ls_sel) * eps_ref[...]


def init_params(key):
    ks = jax.random.split(key, 5)

    def dense(k, fan_in, shape, scale=1.0):
        return scale * jax.random.normal(k, shape, jnp.float32) / jnp.sqrt(fan_in)

    return dict(
        w1=dense(ks[0], S, (S, H)), b1=jnp.zeros((1, H), jnp.float32),
        w2=dense(ks[1], H, (H, H)), b2=jnp.zeros((1, H), jnp.float32),
        wpi=dense(ks[2], H, (H, K)), bpi=jnp.zeros((1, K), jnp.float32),
        wmu=dense(ks[3], H, (K, H, TA)), bmu=jnp.zeros((K, 1, TA), jnp.float32),
        wsig=dense(ks[4], H, (K, H, TA), scale=0.01),
        bsig=jnp.full((K, 1, TA), -1.0, jnp.float32),
    )


def prepare_params(params):
    """Wrapper-side layout plumbing, done ONCE (not per forward call):
    component-major (K,H,TA) heads -> one lane-dense (H,384) bf16 weight + f32 bias,
    MLP weights pre-cast to bf16."""
    wpi_pad = jnp.pad(params["wpi"], ((0, 0), (0, KPAD - K)))
    bpi_pad = jnp.pad(params["bpi"], ((0, 0), (0, KPAD - K)))
    wmu_flat = params["wmu"].transpose(1, 0, 2).reshape(H, K * TA)
    bmu_flat = params["bmu"].transpose(1, 0, 2).reshape(1, K * TA)
    wsig_flat = params["wsig"].transpose(1, 0, 2).reshape(H, K * TA)
    bsig_flat = params["bsig"].transpose(1, 0, 2).reshape(1, K * TA)
    w_fused = jnp.concatenate([wpi_pad, wmu_flat, wsig_flat], axis=1).astype(jnp.bfloat16)
    b_fused = jnp.concatenate([bpi_pad, bmu_flat, bsig_flat], axis=1)  # stays f32
    return dict(
        w1=params["w1"].astype(jnp.bfloat16), b1=params["b1"],
        w2=params["w2"].astype(jnp.bfloat16), b2=params["b2"],
        wf=w_fused, bf=b_fused,
    )


@functools.partial(jax.jit, static_argnames=())
def gmm_model_forward(state, prepped, sample_key):
    """Equivalent of GMMModel.forward: build the mixture and draw one action sample."""
    key_g, key_e = jax.random.split(sample_key)
    gumbel = jax.random.gumbel(key_g, (B, K), dtype=jnp.float32)      # categorical noise
    gumbel_pad = jnp.concatenate(
        [gumbel, jnp.full((B, KPAD - K), NEG, jnp.float32)], axis=1)  # [B, 128]
    eps = jax.random.normal(key_e, (B, TA), dtype=jnp.float32)        # Gaussian noise

    # Whole problem fits trivially in VMEM: no grid, whole-array blocks, single invocation.
    out_flat = pl.pallas_call(
        gmm_forward_kernel,
        out_shape=jax.ShapeDtypeStruct((B, TA), jnp.float32),
    )(state,
      prepped["w1"], prepped["b1"],
      prepped["w2"], prepped["b2"],
      prepped["wf"], prepped["bf"], gumbel_pad, eps)

    return out_flat.reshape(B, T, A)   # glue reshape: [B, T*A] -> [B, T, A]


if __name__ == "__main__":
    root = jax.random.PRNGKey(0)
    k_state, k_param, k_sample = jax.random.split(root, 3)

    params = init_params(k_param)
    prepped = prepare_params(params)       # one-time head fusion + bf16 cast
    state = jax.random.normal(k_state, (B, S), dtype=jnp.float32)

    predicted_action = gmm_model_forward(state, prepped, k_sample)
    jax.block_until_ready(predicted_action)

    assert predicted_action.shape == (B, T, A)
    assert predicted_action.dtype == jnp.float32
    assert bool(jnp.all(jnp.isfinite(predicted_action)))
    print("KERNEL_OK")
</pallas_src>

<mosaic_0001>
module attributes {stable_mosaic.version = 11 : i64} {
  func.func @gmm_forward_kernel(%arg0: memref<16x32xf32, #tpu.memory_space<vmem>>, %arg1: memref<32x32xbf16, #tpu.memory_space<vmem>>, %arg2: memref<1x32xf32, #tpu.memory_space<vmem>>, %arg3: memref<32x32xbf16, #tpu.memory_space<vmem>>, %arg4: memref<1x32xf32, #tpu.memory_space<vmem>>, %arg5: memref<32x384xbf16, #tpu.memory_space<vmem>>, %arg6: memref<1x384xf32, #tpu.memory_space<vmem>>, %arg7: memref<16x128xf32, #tpu.memory_space<vmem>>, %arg8: memref<16x32xf32, #tpu.memory_space<vmem>>, %arg9: memref<16x32xf32, #tpu.memory_space<vmem>>) attributes {dimension_semantics = [], scalar_prefetch = 0 : i64, scratch_operands = 0 : i64, tpu.core_type = #tpu.core_type<tc>} {
    %c0 = arith.constant 0 : index
    %c0_0 = arith.constant 0 : index
    %0 = vector.load %arg0[%c0, %c0_0] : memref<16x32xf32, #tpu.memory_space<vmem>>, vector<16x32xf32>
    %1 = arith.truncf %0 : vector<16x32xf32> to vector<16x32xbf16>
    %c0_1 = arith.constant 0 : index
    %c0_2 = arith.constant 0 : index
    %2 = vector.load %arg1[%c0_1, %c0_2] : memref<32x32xbf16, #tpu.memory_space<vmem>>, vector<32x32xbf16>
    %cst = arith.constant dense<0.000000e+00> : vector<16x32xf32>
    %3 = tpu.matmul %1, %2, %cst {dimension_numbers = #tpu.dot_dimension_numbers<[1], [0], [0], [1], [0, 0, 1, 1], [], []>} : vector<16x32xbf16>, vector<32x32xbf16>, vector<16x32xf32> -> vector<16x32xf32>
    %c0_3 = arith.constant 0 : index
    %c0_4 = arith.constant 0 : index
    %4 = vector.load %arg2[%c0_3, %c0_4] : memref<1x32xf32, #tpu.memory_space<vmem>>, vector<1x32xf32>
    %5 = vector.broadcast %4 : vector<1x32xf32> to vector<16x32xf32>
    %6 = arith.addf %3, %5 : vector<16x32xf32>
    %cst_5 = arith.constant 0.000000e+00 : f32
    %7 = vector.broadcast %cst_5 : f32 to vector<16x32xf32>
    %8 = arith.maximumf %6, %7 : vector<16x32xf32>
    %9 = arith.truncf %8 : vector<16x32xf32> to vector<16x32xbf16>
    %c0_6 = arith.constant 0 : index
    %c0_7 = arith.constant 0 : index
    %10 = vector.load %arg3[%c0_6, %c0_7] : memref<32x32xbf16, #tpu.memory_space<vmem>>, vector<32x32xbf16>
    %cst_8 = arith.constant dense<0.000000e+00> : vector<16x32xf32>
    %11 = tpu.matmul %9, %10, %cst_8 {dimension_numbers = #tpu.dot_dimension_numbers<[1], [0], [0], [1], [0, 0, 1, 1], [], []>} : vector<16x32xbf16>, vector<32x32xbf16>, vector<16x32xf32> -> vector<16x32xf32>
    %c0_9 = arith.constant 0 : index
    %c0_10 = arith.constant 0 : index
    %12 = vector.load %arg4[%c0_9, %c0_10] : memref<1x32xf32, #tpu.memory_space<vmem>>, vector<1x32xf32>
    %13 = vector.broadcast %12 : vector<1x32xf32> to vector<16x32xf32>
    %14 = arith.addf %11, %13 : vector<16x32xf32>
    %cst_11 = arith.constant 0.000000e+00 : f32
    %15 = vector.broadcast %cst_11 : f32 to vector<16x32xf32>
    %16 = arith.maximumf %14, %15 : vector<16x32xf32>
    %17 = arith.truncf %16 : vector<16x32xf32> to vector<16x32xbf16>
    %c0_12 = arith.constant 0 : index
    %c0_13 = arith.constant 0 : index
    %18 = vector.load %arg5[%c0_12, %c0_13] : memref<32x384xbf16, #tpu.memory_space<vmem>>, vector<32x384xbf16>
    %cst_14 = arith.constant dense<0.000000e+00> : vector<16x384xf32>
    %19 = tpu.matmul %17, %18, %cst_14 {dimension_numbers = #tpu.dot_dimension_numbers<[1], [0], [0], [1], [0, 0, 1, 1], [], []>} : vector<16x32xbf16>, vector<32x384xbf16>, vector<16x384xf32> -> vector<16x384xf32>
    %c0_15 = arith.constant 0 : index
    %c0_16 = arith.constant 0 : index
    %20 = vector.load %arg6[%c0_15, %c0_16] : memref<1x384xf32, #tpu.memory_space<vmem>>, vector<1x384xf32>
    %21 = vector.broadcast %20 : vector<1x384xf32> to vector<16x384xf32>
    %22 = arith.addf %19, %21 : vector<16x384xf32>
    %23 = vector.extract_strided_slice %22 {offsets = [0, 0], sizes = [16, 128], strides = [1, 1]} : vector<16x384xf32> to vector<16x128xf32>
    %c0_17 = arith.constant 0 : index
    %c0_18 = arith.constant 0 : index
    %24 = vector.load %arg7[%c0_17, %c0_18] : memref<16x128xf32, #tpu.memory_space<vmem>>, vector<16x128xf32>
    %25 = arith.addf %23, %24 : vector<16x128xf32>
    %cst_19 = arith.constant dense<0xFF800000> : vector<16xf32>
    %26 = vector.multi_reduction <maximumf>, %25, %cst_19 [1] : vector<16x128xf32> to vector<16xf32>
    %27 = vector.shape_cast %26 : vector<16xf32> to vector<16x1xf32>
    %28 = tpu.iota {dimensions = array<i32: 1>} : vector<16x128xi32>
    %29 = vector.broadcast %27 : vector<16x1xf32> to vector<16x128xf32>
    %30 = arith.cmpf oge, %25, %29 : vector<16x128xf32>
    %c4_i32 = arith.constant 4 : i32
    %31 = vector.broadcast %c4_i32 : i32 to vector<16x128xi32>
    %32 = arith.select %30, %28, %31 : vector<16x128xi1>, vector<16x128xi32>
    %cst_20 = arith.constant dense<2147483647> : vector<16xi32>
    %33 = vector.multi_reduction <minsi>, %32, %cst_20 [1] : vector<16x128xi32> to vector<16xi32>
    %34 = vector.shape_cast %33 : vector<16xi32> to vector<16x1xi32>
    %cst_21 = arith.constant 0.000000e+00 : f32
    %35 = vector.broadcast %cst_21 : f32 to vector<16x32xf32>
    %cst_22 = arith.constant 0.000000e+00 : f32
    %36 = vector.broadcast %cst_22 : f32 to vector<16x32xf32>
    %c0_i32 = arith.constant 0 : i32
    %37 = vector.broadcast %c0_i32 : i32 to vector<16x1xi32>
    %38 = arith.cmpi eq, %34, %37 : vector<16x1xi32>
    %39 = arith.extui %38 : vector<16x1xi1> to vector<16x1xi32>
    %40 = arith.sitofp %39 : vector<16x1xi32> to vector<16x1xf32>
    %41 = vector.extract_strided_slice %22 {offsets = [0, 128], sizes = [16, 32], strides = [1, 1]} : vector<16x384xf32> to vector<16x32xf32>
    %42 = vector.broadcast %40 : vector<16x1xf32> to vector<16x32xf32>
    %43 = arith.mulf %42, %41 : vector<16x32xf32>
    %44 = arith.addf %35, %43 : vector<16x32xf32>
    %45 = vector.extract_strided_slice %22 {offsets = [0, 256], sizes = [16, 32], strides = [1, 1]} : vector<16x384xf32> to vector<16x32xf32>
    %46 = vector.broadcast %40 : vector<16x1xf32> to vector<16x32xf32>
    %47 = arith.mulf %46, %45 : vector<16x32xf32>
    %48 = arith.addf %36, %47 : vector<16x32xf32>
    %c1_i32 = arith.constant 1 : i32
    %49 = vector.broadcast %c1_i32 : i32 to vector<16x1xi32>
    %50 = arith.cmpi eq, %34, %49 : vector<16x1xi32>
    %51 = arith.extui %50 : vector<16x1xi1> to vector<16x1xi32>
    %52 = arith.sitofp %51 : vector<16x1xi32> to vector<16x1xf32>
    %53 = vector.extract_strided_slice %22 {offsets = [0, 160], sizes = [16, 32], strides = [1, 1]} : vector<16x384xf32> to vector<16x32xf32>
    %54 = vector.broadcast %52 : vector<16x1xf32> to vector<16x32xf32>
    %55 = arith.mulf %54, %53 : vector<16x32xf32>
    %56 = arith.addf %44, %55 : vector<16x32xf32>
    %57 = vector.extract_strided_slice %22 {offsets = [0, 288], sizes = [16, 32], strides = [1, 1]} : vector<16x384xf32> to vector<16x32xf32>
    %58 = vector.broadcast %52 : vector<16x1xf32> to vector<16x32xf32>
    %59 = arith.mulf %58, %57 : vector<16x32xf32>
    %60 = arith.addf %48, %59 : vector<16x32xf32>
    %c2_i32 = arith.constant 2 : i32
    %61 = vector.broadcast %c2_i32 : i32 to vector<16x1xi32>
    %62 = arith.cmpi eq, %34, %61 : vector<16x1xi32>
    %63 = arith.extui %62 : vector<16x1xi1> to vector<16x1xi32>
    %64 = arith.sitofp %63 : vector<16x1xi32> to vector<16x1xf32>
    %65 = vector.extract_strided_slice %22 {offsets = [0, 192], sizes = [16, 32], strides = [1, 1]} : vector<16x384xf32> to vector<16x32xf32>
    %66 = vector.broadcast %64 : vector<16x1xf32> to vector<16x32xf32>
    %67 = arith.mulf %66, %65 : vector<16x32xf32>
    %68 = arith.addf %56, %67 : vector<16x32xf32>
    %69 = vector.extract_strided_slice %22 {offsets = [0, 320], sizes = [16, 32], strides = [1, 1]} : vector<16x384xf32> to vector<16x32xf32>
    %70 = vector.broadcast %64 : vector<16x1xf32> to vector<16x32xf32>
    %71 = arith.mulf %70, %69 : vector<16x32xf32>
    %72 = arith.addf %60, %71 : vector<16x32xf32>
    %c3_i32 = arith.constant 3 : i32
    %73 = vector.broadcast %c3_i32 : i32 to vector<16x1xi32>
    %74 = arith.cmpi eq, %34, %73 : vector<16x1xi32>
    %75 = arith.extui %74 : vector<16x1xi1> to vector<16x1xi32>
    %76 = arith.sitofp %75 : vector<16x1xi32> to vector<16x1xf32>
    %77 = vector.extract_strided_slice %22 {offsets = [0, 224], sizes = [16, 32], strides = [1, 1]} : vector<16x384xf32> to vector<16x32xf32>
    %78 = vector.broadcast %76 : vector<16x1xf32> to vector<16x32xf32>
    %79 = arith.mulf %78, %77 : vector<16x32xf32>
    %80 = arith.addf %68, %79 : vector<16x32xf32>
    %81 = vector.extract_strided_slice %22 {offsets = [0, 352], sizes = [16, 32], strides = [1, 1]} : vector<16x384xf32> to vector<16x32xf32>
    %82 = vector.broadcast %76 : vector<16x1xf32> to vector<16x32xf32>
    %83 = arith.mulf %82, %81 : vector<16x32xf32>
    %84 = arith.addf %72, %83 : vector<16x32xf32>
    %85 = math.exp %84 : vector<16x32xf32>
    %c0_23 = arith.constant 0 : index
    %c0_24 = arith.constant 0 : index
    %86 = vector.load %arg8[%c0_23, %c0_24] : memref<16x32xf32, #tpu.memory_space<vmem>>, vector<16x32xf32>
    %87 = arith.mulf %85, %86 : vector<16x32xf32>
    %88 = arith.addf %80, %87 : vector<16x32xf32>
    %c0_25 = arith.constant 0 : index
    %c0_26 = arith.constant 0 : index
    %89 = vector.load %arg9[%c0_25, %c0_26] : memref<16x32xf32, #tpu.memory_space<vmem>>, vector<16x32xf32>
    tpu.vector_store %arg9[%c0_25, %c0_26], %88 {strides = array<i32>} : memref<16x32xf32, #tpu.memory_space<vmem>>, vector<16x32xf32>,
    return
  }
}

</mosaic_0001>

<llo_original>
// kernel: gmm_model_forward.3
$region0: #{gmm_model_forward.3}
  #allocation0 [shape = 'u32[]', space=smem, size = 0x4, offset = 0x4, fixed_abs, tag = 'smem constant byte address 0x4 - core index']
  #allocation1 [shape = 'u32[72,128]{1,0:T(1,128)}', space=vmem, size = 0x9000, scoped, tag = 'internal scratch']
  %s0 = inlined_call_operand.vmem [shape: f32[16,32], index: 0, kind: input, shape index: {}]
  %s1 = inlined_call_operand.vmem [shape: bf16[32,32], index: 1, kind: input, shape index: {}]
  %s2 = inlined_call_operand.vmem [shape: f32[1,32], index: 2, kind: input, shape index: {}]
  %s3 = inlined_call_operand.vmem [shape: bf16[32,32], index: 3, kind: input, shape index: {}]
  %s4 = inlined_call_operand.vmem [shape: f32[1,32], index: 4, kind: input, shape index: {}]
  %s5 = inlined_call_operand.vmem [shape: bf16[32,384], index: 5, kind: input, shape index: {}]
  %s6 = inlined_call_operand.vmem [shape: f32[1,384], index: 6, kind: input, shape index: {}]
  %s7 = inlined_call_operand.vmem [shape: f32[16,128], index: 7, kind: input, shape index: {}]
  %s8 = inlined_call_operand.vmem [shape: f32[16,32], index: 8, kind: input, shape index: {}]
  %s9 = inlined_call_operand.vmem [shape: f32[16,32], index: 9, kind: output, shape index: {}]
  %s10 = sld [smem:[#allocation0]]
  $region46: #{gmm_model_forward.3} parent=0
    _
  %s12 = ssub.s32 1, %s10
  %s13 = scalar_select 0, %s12, %s10
  // Predicated region
  $region2: #{gmm_model_forward.3} parent=0 // pred_check
    _
  $region3: #{gmm_model_forward.3} parent=0 // pred_check_branch
    %15 = sbr.rel (0) target = $region5
  $region4: #{gmm_model_forward.3} parent=0 // pred_region
    _
  $region5: #{gmm_model_forward.3} parent=0 // pred_fallthru
    _
  // Predicated region
  $region6: #{gmm_model_forward.3} parent=0 // pred_check
    _
  $region7: #{gmm_model_forward.3} parent=0 // pred_check_branch
    %17 = sbr.rel (0) target = $region9
  $region8: #{gmm_model_forward.3} parent=0 // pred_region
    _
  $region9: #{gmm_model_forward.3} parent=0 // pred_fallthru
    _
  // Predicated region
  $region10: #{gmm_model_forward.3} parent=0 // pred_check
    _
  $region11: #{gmm_model_forward.3} parent=0 // pred_check_branch
    %19 = sbr.rel (0) target = $region13
  $region12: #{gmm_model_forward.3} parent=0 // pred_region
    _
  $region13: #{gmm_model_forward.3} parent=0 // pred_fallthru
    _
  // Predicated region
  $region14: #{gmm_model_forward.3} parent=0 // pred_check
    _
  $region15: #{gmm_model_forward.3} parent=0 // pred_check_branch
    %21 = sbr.rel (0) target = $region17
  $region16: #{gmm_model_forward.3} parent=0 // pred_region
    _
  $region17: #{gmm_model_forward.3} parent=0 // pred_fallthru
    _
  // Predicated region
  $region18: #{gmm_model_forward.3} parent=0 // pred_check
    _
  $region19: #{gmm_model_forward.3} parent=0 // pred_check_branch
    %23 = sbr.rel (0) target = $region21
  $region20: #{gmm_model_forward.3} parent=0 // pred_region
    _
  $region21: #{gmm_model_forward.3} parent=0 // pred_fallthru
    _
  // Predicated region
  $region22: #{gmm_model_forward.3} parent=0 // pred_check
    _
  $region23: #{gmm_model_forward.3} parent=0 // pred_check_branch
    %25 = sbr.rel (0) target = $region25
  $region24: #{gmm_model_forward.3} parent=0 // pred_region
    _
  $region25: #{gmm_model_forward.3} parent=0 // pred_fallthru
    _
  // Predicated region
  $region26: #{gmm_model_forward.3} parent=0 // pred_check
    _
  $region27: #{gmm_model_forward.3} parent=0 // pred_check_branch
    %27 = sbr.rel (0) target = $region29
  $region28: #{gmm_model_forward.3} parent=0 // pred_region
    _
  $region29: #{gmm_model_forward.3} parent=0 // pred_fallthru
    _
  // Predicated region
  $region30: #{gmm_model_forward.3} parent=0 // pred_check
    _
  $region31: #{gmm_model_forward.3} parent=0 // pred_check_branch
    %29 = sbr.rel (0) target = $region33
  $region32: #{gmm_model_forward.3} parent=0 // pred_region
    _
  $region33: #{gmm_model_forward.3} parent=0 // pred_fallthru
    _
  // Predicated region
  $region34: #{gmm_model_forward.3} parent=0 // pred_check
    _
  $region35: #{gmm_model_forward.3} parent=0 // pred_check_branch
    %31 = sbr.rel (0) target = $region37
  $region36: #{gmm_model_forward.3} parent=0 // pred_region
    _
  $region37: #{gmm_model_forward.3} parent=0 // pred_fallthru
    _
  %v33 = vld [vmem:[%s0] sm:$0xff]
  %v34 = vld [vmem:[%s0 + $0x8] sm:$0xff]
  %v35 = vpack.c.bf16 %v34, %v33
  %v36 = vld [vmem:[%s1] sm:$0xf]
  %v37 = vld [vmem:[%s1 + $0x4] sm:$0xf]
  %v38 = vld [vmem:[%s1 + $0x8] sm:$0xf]
  %v39 = vld [vmem:[%s1 + $0xc] sm:$0xf]
  %v40 = vld [vmem:[%s2] sm:$0x1]
  %v42 = vperm.slane %v40, 0
  %v48 = vunpack.c.l.b16 %v36
  %v49 = vunpack.c.l.b16 %v37
  %v50 = vunpack.c.l.b16 %v38
  %v51 = vunpack.c.l.b16 %v39
  %v52 = vpack.c.b16 %v49, %v48
  %v53 = vpack.c.b16 %v51, %v50
  %vm56 = vcmask 261120
  %v58 = vsel %vm56, %v35, 0
  %60 = vmatpush.bf16.msra.mxu0 0
  %61 = vmatpush.bf16.msra.mxu0 0
  %62 = vmatpush.bf16.msra.mxu0 0
  %63 = vmatpush.bf16.msra.mxu0 0
  %64 = vmatpush.bf16.msra.mxu0 0
  %65 = vmatpush.bf16.msra.mxu0 0
  %66 = vmatpush.bf16.msra.mxu0 %v53
  %67 = vmatpush.bf16.msra.mxu0 %v52
  %68 = vmatmul.bf16.gmra.mxu0 %v58
  %v69 = vpop.f32.mrf.mxu0
  %v70 = vadd.f32 %v42, %v69
  %v71 = vpop.f32.mrf.mxu0
  %v72 = vadd.f32 %v42, %v71
  %73 = vdwg.mxu0
  %v74 = vmax.f32 %v70, 0.0
  %v75 = vmax.f32 %v72, 0.0
  %v76 = vpack.c.bf16 %v75, %v74
  %v77 = vld [vmem:[%s3] sm:$0xf]
  %v78 = vld [vmem:[%s3 + $0x4] sm:$0xf]
  %v79 = vld [vmem:[%s3 + $0x8] sm:$0xf]
  %v80 = vld [vmem:[%s3 + $0xc] sm:$0xf]
  %v81 = vld [vmem:[%s4] sm:$0x1]
  %v83 = vperm.slane %v81, 0
  %v89 = vunpack.c.l.b16 %v77
  %v90 = vunpack.c.l.b16 %v78
  %v91 = vunpack.c.l.b16 %v79
  %v92 = vunpack.c.l.b16 %v80
  %v93 = vpack.c.b16 %v90, %v89
  %v94 = vpack.c.b16 %v92, %v91
  %v98 = vsel %vm56, %v76, 0
  %100 = vmatpush.bf16.msra.mxu0 0
  %101 = vmatpush.bf16.msra.mxu0 0
  %102 = vmatpush.bf16.msra.mxu0 0
  %103 = vmatpush.bf16.msra.mxu0 0
  %104 = vmatpush.bf16.msra.mxu0 0
  %105 = vmatpush.bf16.msra.mxu0 0
  %106 = vmatpush.bf16.msra.mxu0 %v94
  %107 = vmatpush.bf16.msra.mxu0 %v93
  %108 = vmatmul.bf16.gmra.mxu0 %v98
  %v109 = vpop.f32.mrf.mxu0
  %v110 = vadd.f32 %v83, %v109
  %v111 = vpop.f32.mrf.mxu0
  %v112 = vadd.f32 %v83, %v111
  %113 = vdwg.mxu0
  %v114 = vmax.f32 %v110, 0.0
  %v115 = vmax.f32 %v112, 0.0
  %v116 = vpack.c.bf16 %v115, %v114
  %v117 = vld [vmem:[%s5] sm:$0xff]
  %v118 = vld [vmem:[%s5 + $0x8] sm:$0xf]
  %v119 = vld [vmem:[%s5 + $0xc] sm:$0xff]
  %v120 = vld [vmem:[%s5 + $0x14] sm:$0xf]
  %v121 = vld [vmem:[%s5 + $0x18] sm:$0xff]
  %v122 = vld [vmem:[%s5 + $0x20] sm:$0xf]
  %v123 = vld [vmem:[%s5 + $0x24] sm:$0xff]
  %v124 = vld [vmem:[%s5 + $0x2c] sm:$0xf]
  %v125 = vld [vmem:[%s6] sm:$0x7]
  %v127 = vperm.slane %v125, 0
  %v128 = vperm.slane %v125, 1
  %v129 = vperm.slane %v125, 2
  %v141 = vunpack.c.l.b16 %v117
  %v142 = vunpack.c.h.b16 %v117
  %v143 = vunpack.c.l.b16 %v118
  %v144 = vunpack.c.l.b16 %v119
  %v145 = vunpack.c.h.b16 %v119
  %v146 = vunpack.c.l.b16 %v120
  %v147 = vunpack.c.l.b16 %v121
  %v148 = vunpack.c.h.b16 %v121
  %v149 = vunpack.c.l.b16 %v122
  %v150 = vunpack.c.l.b16 %v123
  %v151 = vunpack.c.h.b16 %v123
  %v152 = vunpack.c.l.b16 %v124
  %v153 = vpack.c.b16 %v144, %v141
  %v154 = vpack.c.b16 %v145, %v142
  %v155 = vpack.c.b16 %v146, %v143
  %v156 = vpack.c.b16 %v150, %v147
  %v157 = vpack.c.b16 %v151, %v148
  %v158 = vpack.c.b16 %v152, %v149
  %v166 = vsel %vm56, %v116, 0
  %168 = vmatpush.bf16.msra.mxu0 0
  %169 = vmatpush.bf16.msra.mxu0 0
  %170 = vmatpush.bf16.msra.mxu0 0
  %171 = vmatpush.bf16.msra.mxu0 0
  %172 = vmatpush.bf16.msra.mxu0 0
  %173 = vmatpush.bf16.msra.mxu0 0
  %174 = vmatpush.bf16.msra.mxu0 %v156
  %175 = vmatpush.bf16.msra.mxu0 %v153
  %176 = vmatmul.bf16.gmra.mxu0 %v166
  %v177 = vpop.f32.mrf.mxu0
  %v178 = vadd.f32 %v127, %v177
  %v179 = vpop.f32.mrf.mxu0
  %v180 = vadd.f32 %v127, %v179
  %181 = vdwg.mxu0
  %182 = vmatpush.bf16.msra.mxu0 0
  %183 = vmatpush.bf16.msra.mxu0 0
  %184 = vmatpush.bf16.msra.mxu0 0
  %185 = vmatpush.bf16.msra.mxu0 0
  %186 = vmatpush.bf16.msra.mxu0 0
  %187 = vmatpush.bf16.msra.mxu0 0
  %188 = vmatpush.bf16.msra.mxu0 %v157
  %189 = vmatpush.bf16.msra.mxu0 %v154
  %190 = vmatmul.bf16.gmra.mxu0 %v166
  %v191 = vpop.f32.mrf.mxu0
  %v192 = vadd.f32 %v128, %v191
  %v193 = vpop.f32.mrf.mxu0
  %v194 = vadd.f32 %v128, %v193
  %195 = vdwg.mxu0
  %196 = vmatpush.bf16.msra.mxu0 0
  %197 = vmatpush.bf16.msra.mxu0 0
  %198 = vmatpush.bf16.msra.mxu0 0
  %199 = vmatpush.bf16.msra.mxu0 0
  %200 = vmatpush.bf16.msra.mxu0 0
  %201 = vmatpush.bf16.msra.mxu0 0
  %202 = vmatpush.bf16.msra.mxu0 %v158
  %203 = vmatpush.bf16.msra.mxu0 %v155
  %204 = vmatmul.bf16.gmra.mxu0 %v166
  %v205 = vpop.f32.mrf.mxu0
  %v206 = vadd.f32 %v129, %v205
  %v207 = vpop.f32.mrf.mxu0
  %v208 = vadd.f32 %v129, %v207
  %209 = vdwg.mxu0
  %v210 = vld [vmem:[%s7] sm:$0xff]
  %v211 = vld [vmem:[%s7 + $0x8] sm:$0xff]
  %v212 = vadd.f32 %v178, %v210
  %v213 = vadd.f32 %v180, %v211
  %214 = vmax.xlane.f32.xlu0 %v212
  %v215 = vpop.xlane.xlu0 %214
  %216 = vmax.xlane.f32.xlu0 %v213
  %v217 = vpop.xlane.xlu0 %216
  %v218 = vlaneseq
  %v219 = vand.u32 %v218, 127
  %vm220 = vcmp.ge.f32.partialorder %v212, %v215
  %vm221 = vcmp.ge.f32.partialorder %v213, %v217
  %v222 = vsel %vm220, %v219, 4
  %v223 = vsel %vm221, %v219, 4
  %v224 = vand.u32 %v222, 65535
  %v225 = vshra.s32 %v222, 16
  %v226 = vcvt.s32.f32 %v224
  %v227 = vcvt.s32.f32 %v225
  %228 = vmin.xlane.f32.xlu0 %v227
  %v229 = vpop.xlane.xlu0 %228
  %vm230 = vcmp.eq.f32.partialorder %v227, %v229
  %v231 = vsel %vm230, %v226, inf
  %232 = vmin.xlane.f32.xlu0 %v231
  %v233 = vpop.xlane.xlu0 %232
  %v234 = vcvt.f32.s32 %v233
  %v235 = vcvt.f32.s32 %v229
  %v236 = vshll.u32 %v235, 16
  %v237 = vadd.s32 %v236, %v234
  %v238 = vand.u32 %v223, 65535
  %v239 = vshra.s32 %v223, 16
  %v240 = vcvt.s32.f32 %v238
  %v241 = vcvt.s32.f32 %v239
  %242 = vmin.xlane.f32.xlu0 %v241
  %v243 = vpop.xlane.xlu0 %242
  %vm244 = vcmp.eq.f32.partialorder %v241, %v243
  %v245 = vsel %vm244, %v240, inf
  %246 = vmin.xlane.f32.xlu0 %v245
  %v247 = vpop.xlane.xlu0 %246
  %v248 = vcvt.f32.s32 %v247
  %v249 = vcvt.f32.s32 %v243
  %v250 = vshll.u32 %v249, 16
  %v251 = vadd.s32 %v250, %v248
  %vm252 = vcmp.eq.s32.totalorder %v237, 0
  %vm253 = vcmp.eq.s32.totalorder %v251, 0
  %v254 = vsel %vm252, 1, 0
  %v255 = vsel %vm253, 1, 0
  %v256 = vcvt.s32.f32 %v254
  %v257 = vcvt.s32.f32 %v255
  %v258 = vmul.f32 %v256, %v192
  %v259 = vmul.f32 %v257, %v194
  %v260 = vadd.f32 %v258, 0.0
  %v261 = vadd.f32 %v259, 0.0
  %v262 = vmul.f32 %v256, %v206
  %v263 = vmul.f32 %v257, %v208
  %v264 = vadd.f32 %v262, 0.0
  %v265 = vadd.f32 %v263, 0.0
  %vm266 = vcmp.eq.s32.totalorder %v237, 1
  %vm267 = vcmp.eq.s32.totalorder %v251, 1
  %v268 = vsel %vm266, 1, 0
  %v269 = vsel %vm267, 1, 0
  %v270 = vcvt.s32.f32 %v268
  %v271 = vcvt.s32.f32 %v269
  %v272 = vmul.f32 %v270, %v192
  %v273 = vmul.f32 %v271, %v194
  %276 = vrot.lane.b32.xlu0 %v272, 96
  %v277 = vpop.permute.xlu0 %276
  %278 = vrot.lane.b32.xlu0 %v273, 96
  %v279 = vpop.permute.xlu0 %278
  %v282 = vadd.f32 %v260, %v277
  %v283 = vadd.f32 %v261, %v279
  %v284 = vmul.f32 %v270, %v206
  %v285 = vmul.f32 %v271, %v208
  %288 = vrot.lane.b32.xlu0 %v284, 96
  %v289 = vpop.permute.xlu0 %288
  %290 = vrot.lane.b32.xlu0 %v285, 96
  %v291 = vpop.permute.xlu0 %290
  %v294 = vadd.f32 %v264, %v289
  %v295 = vadd.f32 %v265, %v291
  %vm296 = vcmp.eq.s32.totalorder %v237, 2
  %vm297 = vcmp.eq.s32.totalorder %v251, 2
  %v298 = vsel %vm296, 1, 0
  %v299 = vsel %vm297, 1, 0
  %v300 = vcvt.s32.f32 %v298
  %v301 = vcvt.s32.f32 %v299
  %v302 = vmul.f32 %v300, %v192
  %v303 = vmul.f32 %v301, %v194
  %306 = vrot.lane.b32.xlu0 %v302, 64
  %v307 = vpop.permute.xlu0 %306
  %308 = vrot.lane.b32.xlu0 %v303, 64
  %v309 = vpop.permute.xlu0 %308
  %v312 = vadd.f32 %v282, %v307
  %v313 = vadd.f32 %v283, %v309
  %v314 = vmul.f32 %v300, %v206
  %v315 = vmul.f32 %v301, %v208
  %318 = vrot.lane.b32.xlu0 %v314, 64
  %v319 = vpop.permute.xlu0 %318
  %320 = vrot.lane.b32.xlu0 %v315, 64
  %v321 = vpop.permute.xlu0 %320
  %v324 = vadd.f32 %v294, %v319
  %v325 = vadd.f32 %v295, %v321
  %vm326 = vcmp.eq.s32.totalorder %v237, 3
  %vm327 = vcmp.eq.s32.totalorder %v251, 3
  %v328 = vsel %vm326, 1, 0
  %v329 = vsel %vm327, 1, 0
  %v330 = vcvt.s32.f32 %v328
  %v331 = vcvt.s32.f32 %v329
  %v332 = vmul.f32 %v330, %v192
  %v333 = vmul.f32 %v331, %v194
  %336 = vrot.lane.b32.xlu0 %v332, 32
  %v337 = vpop.permute.xlu0 %336
  %338 = vrot.lane.b32.xlu0 %v333, 32
  %v339 = vpop.permute.xlu0 %338
  %v342 = vadd.f32 %v312, %v337
  %v343 = vadd.f32 %v313, %v339
  %v344 = vmul.f32 %v330, %v206
  %v345 = vmul.f32 %v331, %v208
  %348 = vrot.lane.b32.xlu0 %v344, 32
  %v349 = vpop.permute.xlu0 %348
  %350 = vrot.lane.b32.xlu0 %v345, 32
  %v351 = vpop.permute.xlu0 %350
  %v354 = vadd.f32 %v324, %v349
  %v355 = vadd.f32 %v325, %v351
  %v356 = vmul.f32 %v354, 1.442695
  %v357 = vpow.pop %v356
  %v358 = vmul.f32 %v355, 1.442695
  %v359 = vpow.pop %v358
  %v360 = vld [vmem:[%s8] sm:$0xff]
  %v361 = vld [vmem:[%s8 + $0x8] sm:$0xff]
  %v362 = vmul.f32 %v357, %v360
  %v363 = vmul.f32 %v359, %v361
  %v364 = vadd.f32 %v342, %v362
  %v365 = vadd.f32 %v343, %v363
  %366 = vst.msk [vmem:[%s9] sm:$0xff] %vm56, %v364
  %367 = vst.msk [vmem:[%s9 + $0x8] sm:$0xff] %vm56, %v365
  // Predicated region
  $region38: #{gmm_model_forward.3} parent=0 // pred_check
    _
  $region39: #{gmm_model_forward.3} parent=0 // pred_check_branch
    %369 = sbr.rel (0) target = $region41
  $region40: #{gmm_model_forward.3} parent=0 // pred_region
    _
  $region41: #{gmm_model_forward.3} parent=0 // pred_fallthru
    _
  // Predicated region
  $region42: #{gmm_model_forward.3} parent=0 // pred_check
    _
  $region43: #{gmm_model_forward.3} parent=0 // pred_check_branch
    %371 = sbr.rel (0) target = $region45
  $region44: #{gmm_model_forward.3} parent=0 // pred_region
    _
  $region45: #{gmm_model_forward.3} parent=0 // pred_fallthru
    _

</llo_original>
